<compile_context>
chip_gen: v5e
topology: v5e:2x2
jax: 0.10.0
libtpu: 0.0.40
codegen_flags: <defaults>
</compile_context>

<pallas_src>
import functools

import jax
import jax.numpy as jnp
from jax import lax
from jax.experimental import pallas as pl
from jax.experimental.pallas import tpu as pltpu


def _cdiv(a, b):
    return -(-a // b)


def _round_up(v, m):
    return ((v + m - 1) // m) * m


def _vmem_capacity_bytes():
    """Per-generation VMEM capacity (falls back to the smallest, v7x)."""
    try:
        info = pltpu.get_tpu_info()
        cap = getattr(info, "vmem_capacity_bytes", None)
        if cap:
            return int(cap)
    except Exception:
        pass
    return 64 << 20


def _flatten_head_kernel(x_ref, w_ref, b_ref, o_ref, acc_ref, *, k_total, tk, mask_k):
    # x_ref: [tm, tk], w_ref: [tk, N_pad], b_ref: [1, N_pad]
    # o_ref: [tm, N_pad], acc_ref: [tm, N_pad] f32 scratch.
    k = pl.program_id(1)

    @pl.when(k == 0)
    def _():
        acc_ref[...] = jnp.zeros_like(acc_ref)

    x = x_ref[...]
    w = w_ref[...]
    if mask_k:
        # Last K tile is ragged: zero out columns/rows read past K so garbage
        # (possibly NaN) memory never reaches the accumulator.
        limit = k_total - k * tk
        x = jnp.where(lax.broadcasted_iota(jnp.int32, x.shape, 1) < limit, x, 0)
        w = jnp.where(lax.broadcasted_iota(jnp.int32, w.shape, 0) < limit, w, 0)

    acc_ref[...] += jnp.dot(x, w, preferred_element_type=jnp.float32)

    @pl.when(k == pl.num_programs(1) - 1)
    def _():
        # Bias add rides free VPU slots under MXU/DMA slack.
        o_ref[...] = (acc_ref[...] + b_ref[...].astype(jnp.float32)).astype(o_ref.dtype)
    # TODO(synk): nn.Dropout is identity in eval mode / p=0, so no-op here.


def flatten_head(x, weight, bias, *, tm_target=512, tk_target=2048):
    """x: [B, n_vars, d_model, patch_num]; weight: [target_window, nf]; bias: [target_window]."""
    B, n_vars, d_model, patch_num = x.shape
    nf = d_model * patch_num
    target_window = weight.shape[0]
    assert weight.shape == (target_window, nf)
    assert bias.shape == (target_window,)

    M, K, N = B * n_vars, nf, target_window
    N_pad = _round_up(N, 128)                 # lane-dense output stores

    x_item = jnp.dtype(x.dtype).itemsize
    w_item = jnp.dtype(weight.dtype).itemsize
    o_item = x_item

    # VMEM budget derived per generation (~80% of capacity, headroom for
    # compiler-internal scratch): ~51 MiB on v7x (64 MiB), ~102 MiB on v5e/v6e.
    cap = _vmem_capacity_bytes()
    budget = min(int(cap * 0.8), cap - (8 << 20))

    # Row tile: multiple of 8 sublanes; guarantee >=2 M-steps when M allows it
    # (keeps the DMA/MXU pipeline alive and feeds both v7x TensorCores).
    tm = min(tm_target, _round_up(M, 8))
    if M > 8:
        tm = min(tm, _round_up(_cdiv(M, 2), 8))
    tm = max(8, tm)

    def vmem_need(tm_, tk_, nk_):
        w_bufs = 1 if nk_ == 1 else 2
        return (2 * tm_ * tk_ * x_item            # x row tiles (double-buffered)
                + w_bufs * tk_ * N_pad * w_item   # weight tiles
                + N_pad * w_item                  # bias (resident, single buffer)
                + 2 * tm_ * N_pad * o_item        # output tiles (double-buffered)
                + tm_ * N_pad * 4)                # f32 accumulator scratch

    # K tiling: keep full K resident when it fits the budget; otherwise tile K
    # in multiples of 128 so VMEM use is independent of nf.
    if K <= 128 or vmem_need(tm, K, 1) <= budget:
        tk = K
    else:
        fixed = N_pad * w_item + 2 * tm * N_pad * o_item + tm * N_pad * 4
        per_k = 2 * tm * x_item + 2 * N_pad * w_item
        tk = max(128, ((budget - fixed) // per_k) // 128 * 128)
        tk = min(tk, tk_target)
        tk = min(tk, K)                       # tk == K -> full-dim block, still legal
    n_k = _cdiv(K, tk)

    # Last-resort: shrink the row tile rather than silently under-provisioning.
    while tm > 8 and vmem_need(tm, tk, n_k) > budget:
        tm = max(8, _round_up(tm // 2, 8))
    n_m = _cdiv(M, tm)

    need = vmem_need(tm, tk, n_k)
    vmem_limit = int(min(cap, max(need + (4 << 20), 16 << 20)))

    # Wrapper-side glue. x is only reshaped (no M pad -> no extra HBM pass over
    # the dominant operand).  Weight/bias pad + transpose are one-time passes
    # over small static tensors; in production they belong at param-init time.
    x2d = x.reshape(M, K)
    w_p = weight if N_pad == N else jnp.pad(weight, ((0, N_pad - N), (0, 0)))
    w_t = w_p.T                                               # [K, N_pad]
    b2d = (bias if N_pad == N else jnp.pad(bias, (0, N_pad - N))).reshape(1, N_pad)

    cost = pl.CostEstimate(
        flops=2 * M * K * N,
        transcendentals=0,
        bytes_accessed=int(M * K * x_item + K * N_pad * w_item
                           + N_pad * w_item + M * N_pad * o_item),
    )

    kernel = functools.partial(_flatten_head_kernel, k_total=K, tk=tk,
                               mask_k=(K % tk != 0))

    def _run(single_buffer_resident):
        # Constant-index (resident) blocks don't need a second pipeline buffer.
        resident = ({"pipeline_mode": pl.Buffered(1)}
                    if (single_buffer_resident and hasattr(pl, "Buffered")) else {})
        w_kwargs = resident if n_k == 1 else {}
        grid_spec = pltpu.PrefetchScalarGridSpec(
            num_scalar_prefetch=0,
            grid=(n_m, n_k),
            in_specs=[
                pl.BlockSpec((tm, tk), lambda i, k: (i, k)),           # x row/K tile
                pl.BlockSpec((tk, N_pad), lambda i, k: (k, 0), **w_kwargs),  # weight
                pl.BlockSpec((1, N_pad), lambda i, k: (0, 0), **resident),   # bias
            ],
            out_specs=pl.BlockSpec((tm, N_pad), lambda i, k: (i, 0)),
            scratch_shapes=[pltpu.VMEM((tm, N_pad), jnp.float32)],
        )
        return pl.pallas_call(
            kernel,
            out_shape=jax.ShapeDtypeStruct((M, N_pad), x.dtype),
            grid_spec=grid_spec,
            compiler_params=pltpu.CompilerParams(
                dimension_semantics=("parallel", "arbitrary"),
                vmem_limit_bytes=vmem_limit,
            ),
            cost_estimate=cost,
        )(x2d, w_t, b2d)

    try:
        out2d = _run(True)
    except Exception:
        # Fallback for jax versions where Buffered(1) blocks are not accepted.
        out2d = _run(False)

    return out2d[:, :N].reshape(B, n_vars, target_window)


if __name__ == "__main__":
    # Small shapes consistent with the module's forward.
    B, n_vars, d_model, patch_num = 2, 4, 8, 4
    nf = d_model * patch_num            # 32
    target_window = 16

    key = jax.random.PRNGKey(0)
    kx, kw, kb = jax.random.split(key, 3)

    x = jax.random.normal(kx, (B, n_vars, d_model, patch_num), dtype=jnp.float32)

    # Deterministic nn.Linear-style init: U(-1/sqrt(nf), 1/sqrt(nf)).
    bound = 1.0 / (nf ** 0.5)
    weight = jax.random.uniform(kw, (target_window, nf), minval=-bound, maxval=bound,
                                dtype=jnp.float32)
    bias = jax.random.uniform(kb, (target_window,), minval=-bound, maxval=bound,
                              dtype=jnp.float32)

    out = flatten_head(x, weight, bias)
    out = jax.block_until_ready(out)

    # Reference check in plain JAX (same semantics as the PyTorch module in eval mode).
    ref = x.reshape(B, n_vars, nf) @ weight.T + bias
    assert out.shape == (B, n_vars, target_window)
    assert jnp.allclose(out, ref, atol=1e-5, rtol=1e-5)

    print("KERNEL_OK")
</pallas_src>

<mosaic_0001>
module attributes {stable_mosaic.version = 11 : i64} {
  func.func @_flatten_head_kernel(%arg0: i32, %arg1: i32, %arg2: memref<8x32xf32, #tpu.memory_space<vmem>>, %arg3: memref<32x128xf32, #tpu.memory_space<vmem>>, %arg4: memref<1x128xf32, #tpu.memory_space<vmem>>, %arg5: memref<8x128xf32, #tpu.memory_space<vmem>>, %arg6: memref<8x128xf32, #tpu.memory_space<vmem>>) attributes {dimension_semantics = [#tpu.dimension_semantics<parallel>, #tpu.dimension_semantics<arbitrary>], iteration_bounds = array<i64: 1, 1>, scalar_prefetch = 0 : i64, scratch_operands = 1 : i64, tpu.core_type = #tpu.core_type<tc>, window_params = [{transform_indices = @transform_0, window_bounds = array<i64: 8, 32>}, {pipeline_mode = #tpu.pipeline_mode<synchronous>, transform_indices = @transform_1, window_bounds = array<i64: 32, 128>}, {pipeline_mode = #tpu.pipeline_mode<synchronous>, transform_indices = @transform_2, window_bounds = array<i64: 1, 128>}, {transform_indices = @transform_3, window_bounds = array<i64: 8, 128>}]} {
    %c0_i32 = arith.constant 0 : i32
    %0 = arith.cmpi eq, %arg1, %c0_i32 : i32
    %1 = arith.extui %0 : i1 to i32
    %c0_i32_0 = arith.constant 0 : i32
    %2 = arith.cmpi ne, %1, %c0_i32_0 : i32
    scf.if %2 {
      %cst_10 = arith.constant 0.000000e+00 : f32
      %12 = vector.broadcast %cst_10 : f32 to vector<8x128xf32>
      %c0_11 = arith.constant 0 : index
      %c0_12 = arith.constant 0 : index
      %13 = vector.load %arg6[%c0_11, %c0_12] : memref<8x128xf32, #tpu.memory_space<vmem>>, vector<8x128xf32>
      tpu.vector_store %arg6[%c0_11, %c0_12], %12 {strides = array<i32>} : memref<8x128xf32, #tpu.memory_space<vmem>>, vector<8x128xf32>,
    } else {
    }
    %c0 = arith.constant 0 : index
    %c0_1 = arith.constant 0 : index
    %3 = vector.load %arg2[%c0, %c0_1] : memref<8x32xf32, #tpu.memory_space<vmem>>, vector<8x32xf32>
    %c0_2 = arith.constant 0 : index
    %c0_3 = arith.constant 0 : index
    %4 = vector.load %arg3[%c0_2, %c0_3] : memref<32x128xf32, #tpu.memory_space<vmem>>, vector<32x128xf32>
    %c0_4 = arith.constant 0 : index
    %c0_5 = arith.constant 0 : index
    %5 = vector.load %arg6[%c0_4, %c0_5] : memref<8x128xf32, #tpu.memory_space<vmem>>, vector<8x128xf32>
    %cst = arith.constant dense<0.000000e+00> : vector<8x128xf32>
    %6 = tpu.matmul %3, %4, %cst {dimension_numbers = #tpu.dot_dimension_numbers<[1], [0], [0], [1], [0, 0, 1, 1], [], []>} : vector<8x32xf32>, vector<32x128xf32>, vector<8x128xf32> -> vector<8x128xf32>
    %7 = arith.addf %5, %6 : vector<8x128xf32>
    %c0_6 = arith.constant 0 : index
    %c0_7 = arith.constant 0 : index
    %8 = vector.load %arg6[%c0_6, %c0_7] : memref<8x128xf32, #tpu.memory_space<vmem>>, vector<8x128xf32>
    tpu.vector_store %arg6[%c0_6, %c0_7], %7 {strides = array<i32>} : memref<8x128xf32, #tpu.memory_space<vmem>>, vector<8x128xf32>,
    %c0_i32_8 = arith.constant 0 : i32
    %9 = arith.cmpi eq, %arg1, %c0_i32_8 : i32
    %10 = arith.extui %9 : i1 to i32
    %c0_i32_9 = arith.constant 0 : i32
    %11 = arith.cmpi ne, %10, %c0_i32_9 : i32
    scf.if %11 {
      %c0_10 = arith.constant 0 : index
      %c0_11 = arith.constant 0 : index
      %12 = vector.load %arg6[%c0_10, %c0_11] : memref<8x128xf32, #tpu.memory_space<vmem>>, vector<8x128xf32>
      %c0_12 = arith.constant 0 : index
      %c0_13 = arith.constant 0 : index
      %13 = vector.load %arg4[%c0_12, %c0_13] : memref<1x128xf32, #tpu.memory_space<vmem>>, vector<1x128xf32>
      %14 = vector.broadcast %13 : vector<1x128xf32> to vector<8x128xf32>
      %15 = arith.addf %12, %14 : vector<8x128xf32>
      %c0_14 = arith.constant 0 : index
      %c0_15 = arith.constant 0 : index
      %16 = vector.load %arg5[%c0_14, %c0_15] : memref<8x128xf32, #tpu.memory_space<vmem>>, vector<8x128xf32>
      tpu.vector_store %arg5[%c0_14, %c0_15], %15 {strides = array<i32>} : memref<8x128xf32, #tpu.memory_space<vmem>>, vector<8x128xf32>,
    } else {
    }
    return
  }
  func.func @transform_0(%arg0: i32, %arg1: i32) -> (i32, i32) {
    %c0_i32 = arith.constant 0 : i32
    return %arg0, %arg1 : i32, i32
  }
  func.func @transform_1(%arg0: i32, %arg1: i32) -> (i32, i32) {
    %c0_i32 = arith.constant 0 : i32
    %c0_i32_0 = arith.constant 0 : i32
    return %arg1, %c0_i32 : i32, i32
  }
  func.func @transform_2(%arg0: i32, %arg1: i32) -> (i32, i32) {
    %c0_i32 = arith.constant 0 : i32
    %c0_i32_0 = arith.constant 0 : i32
    %c0_i32_1 = arith.constant 0 : i32
    return %c0_i32, %c0_i32_0 : i32, i32
  }
  func.func @transform_3(%arg0: i32, %arg1: i32) -> (i32, i32) {
    %c0_i32 = arith.constant 0 : i32
    %c0_i32_0 = arith.constant 0 : i32
    return %arg0, %c0_i32 : i32, i32
  }
}

module attributes {stable_mosaic.version = 11 : i64} {
  func.func @_flatten_head_kernel(%arg0: i32, %arg1: i32, %arg2: memref<8x32xf32, #tpu.memory_space<vmem>>, %arg3: memref<32x128xf32, #tpu.memory_space<vmem>>, %arg4: memref<1x128xf32, #tpu.memory_space<vmem>>, %arg5: memref<8x128xf32, #tpu.memory_space<vmem>>, %arg6: memref<8x128xf32, #tpu.memory_space<vmem>>) attributes {dimension_semantics = [#tpu.dimension_semantics<parallel>, #tpu.dimension_semantics<arbitrary>], iteration_bounds = array<i64: 1, 1>, scalar_prefetch = 0 : i64, scratch_operands = 1 : i64, tpu.core_type = #tpu.core_type<tc>, window_params = [{transform_indices = @transform_0, window_bounds = array<i64: 8, 32>}, {transform_indices = @transform_1, window_bounds = array<i64: 32, 128>}, {pipeline_mode = #tpu.pipeline_mode<synchronous>, transform_indices = @transform_2, window_bounds = array<i64: 1, 128>}, {transform_indices = @transform_3, window_bounds = array<i64: 8, 128>}]} {
    %c0_i32 = arith.constant 0 : i32
    %0 = arith.cmpi eq, %arg1, %c0_i32 : i32
    %1 = arith.extui %0 : i1 to i32
    %c0_i32_0 = arith.constant 0 : i32
    %2 = arith.cmpi ne, %1, %c0_i32_0 : i32
    scf.if %2 {
      %cst_10 = arith.constant 0.000000e+00 : f32
      %12 = vector.broadcast %cst_10 : f32 to vector<8x128xf32>
      %c0_11 = arith.constant 0 : index
      %c0_12 = arith.constant 0 : index
      %13 = vector.load %arg6[%c0_11, %c0_12] : memref<8x128xf32, #tpu.memory_space<vmem>>, vector<8x128xf32>
      tpu.vector_store %arg6[%c0_11, %c0_12], %12 {strides = array<i32>} : memref<8x128xf32, #tpu.memory_space<vmem>>, vector<8x128xf32>,
    } else {
    }
    %c0 = arith.constant 0 : index
    %c0_1 = arith.constant 0 : index
    %3 = vector.load %arg2[%c0, %c0_1] : memref<8x32xf32, #tpu.memory_space<vmem>>, vector<8x32xf32>
    %c0_2 = arith.constant 0 : index
    %c0_3 = arith.constant 0 : index
    %4 = vector.load %arg3[%c0_2, %c0_3] : memref<32x128xf32, #tpu.memory_space<vmem>>, vector<32x128xf32>
    %c0_4 = arith.constant 0 : index
    %c0_5 = arith.constant 0 : index
    %5 = vector.load %arg6[%c0_4, %c0_5] : memref<8x128xf32, #tpu.memory_space<vmem>>, vector<8x128xf32>
    %cst = arith.constant dense<0.000000e+00> : vector<8x128xf32>
    %6 = tpu.matmul %3, %4, %cst {dimension_numbers = #tpu.dot_dimension_numbers<[1], [0], [0], [1], [0, 0, 1, 1], [], []>} : vector<8x32xf32>, vector<32x128xf32>, vector<8x128xf32> -> vector<8x128xf32>
    %7 = arith.addf %5, %6 : vector<8x128xf32>
    %c0_6 = arith.constant 0 : index
    %c0_7 = arith.constant 0 : index
    %8 = vector.load %arg6[%c0_6, %c0_7] : memref<8x128xf32, #tpu.memory_space<vmem>>, vector<8x128xf32>
    tpu.vector_store %arg6[%c0_6, %c0_7], %7 {strides = array<i32>} : memref<8x128xf32, #tpu.memory_space<vmem>>, vector<8x128xf32>,
    %c0_i32_8 = arith.constant 0 : i32
    %9 = arith.cmpi eq, %arg1, %c0_i32_8 : i32
    %10 = arith.extui %9 : i1 to i32
    %c0_i32_9 = arith.constant 0 : i32
    %11 = arith.cmpi ne, %10, %c0_i32_9 : i32
    scf.if %11 {
      %c0_10 = arith.constant 0 : index
      %c0_11 = arith.constant 0 : index
      %12 = vector.load %arg6[%c0_10, %c0_11] : memref<8x128xf32, #tpu.memory_space<vmem>>, vector<8x128xf32>
      %c0_12 = arith.constant 0 : index
      %c0_13 = arith.constant 0 : index
      %13 = vector.load %arg4[%c0_12, %c0_13] : memref<1x128xf32, #tpu.memory_space<vmem>>, vector<1x128xf32>
      %14 = vector.broadcast %13 : vector<1x128xf32> to vector<8x128xf32>
      %15 = arith.addf %12, %14 : vector<8x128xf32>
      %c0_14 = arith.constant 0 : index
      %c0_15 = arith.constant 0 : index
      %16 = vector.load %arg5[%c0_14, %c0_15] : memref<8x128xf32, #tpu.memory_space<vmem>>, vector<8x128xf32>
      tpu.vector_store %arg5[%c0_14, %c0_15], %15 {strides = array<i32>} : memref<8x128xf32, #tpu.memory_space<vmem>>, vector<8x128xf32>,
    } else {
    }
    return
  }
  func.func @transform_0(%arg0: i32, %arg1: i32) -> (i32, i32) {
    %c0_i32 = arith.constant 0 : i32
    return %arg0, %arg1 : i32, i32
  }
  func.func @transform_1(%arg0: i32, %arg1: i32) -> (i32, i32) {
    %c0_i32 = arith.constant 0 : i32
    %c0_i32_0 = arith.constant 0 : i32
    return %arg1, %c0_i32 : i32, i32
  }
  func.func @transform_2(%arg0: i32, %arg1: i32) -> (i32, i32) {
    %c0_i32 = arith.constant 0 : i32
    %c0_i32_0 = arith.constant 0 : i32
    %c0_i32_1 = arith.constant 0 : i32
    return %c0_i32, %c0_i32_0 : i32, i32
  }
  func.func @transform_3(%arg0: i32, %arg1: i32) -> (i32, i32) {
    %c0_i32 = arith.constant 0 : i32
    %c0_i32_0 = arith.constant 0 : i32
    return %arg0, %c0_i32 : i32, i32
  }
}

</mosaic_0001>

<llo_original>
// kernel: tpu_custom_call.1
$region0: #{tpu_custom_call.1}
  #allocation0 [shape = 'u32[]', space=smem, size = 0x4, offset = 0x4, fixed_abs, tag = 'smem constant byte address 0x4 - core index']
  #allocation1 [shape = 'u32[72,128]{1,0:T(1,128)}', space=vmem, size = 0x9000, scoped, tag = 'internal scratch']
  #allocation2 [shape = 'f32[8,128]{1,0:T(8,128)}', space=vmem, size = 0x1000, scoped, tag = 'scratch operand']
  %s0 = inlined_call_operand.hbm [shape: f32[8,32], index: 0, kind: input, shape index: {}]
  %s1 = inlined_call_operand.hbm [shape: f32[32,128], index: 1, kind: input, shape index: {}]
  %s2 = inlined_call_operand.vmem [shape: f32[1,128], index: 2, kind: input, shape index: {}]
  %s3 = inlined_call_operand.hbm [shape: f32[8,128], index: 3, kind: output, shape index: {}]
  %s4 = sld [smem:[#allocation0]]
  $region38: #{tpu_custom_call.1} parent=0
    _
  %s6 = ssub.s32 1, %s4
  %s7 = scalar_select 0, %s6, %s4
  $region1: #{tpu_custom_call.1} parent=0
    #allocation3 [shape = 'u8[4096]{0}', space=vmem, size = 0x1000, scoped, tag = 'input window, operand 0, single buffered']
    #allocation4 [shape = 's32[1]{0}', space=sflag, size = 0x4, scoped, tag = 'scoped memory for tpu_custom_call.1']
    #allocation5 [shape = 's32[1]{0}', space=sflag, size = 0x4, scoped, tag = 'scoped memory for tpu_custom_call.1']
    #allocation6 [shape = 'u8[16384]{0}', space=vmem, size = 0x4000, scoped, tag = 'input window, operand 1, single buffered']
    #allocation7 [shape = 's32[1]{0}', space=sflag, size = 0x4, scoped, tag = 'scoped memory for tpu_custom_call.1']
    #allocation8 [shape = 'u8[4096]{0}', space=vmem, size = 0x1000, scoped, tag = 'output window, operand 0, single buffered']
    %8 = vsyncpa [#allocation4], 0
    %9 = vsyncpa [#allocation7], 0
    %10 = vsyncpa [#allocation5], 0
    // Predicated region
    $region2: #{tpu_custom_call.1} parent=1 // pred_check
      _
    $region3: #{tpu_custom_call.1} parent=1 // pred_check_branch
      %12 = sbr.rel (0) target = $region5
    $region4: #{tpu_custom_call.1} parent=1 // pred_region
      %14 = vsyncadd [#allocation4], 0
      %s16 = sshll.u32 %s0, 4
      %s17 = int_to_ptr.hbm [resolvable:$true] %s16
      %s18 = sshll.u32 [#allocation3], 4
      %s19 = int_to_ptr.vmem [resolvable:$true] %s18
      %21 = dma.hbm_to_vmem [thread:$0]  %s17, 128, %s19, [#allocation4]
    $region5: #{tpu_custom_call.1} parent=1 // pred_fallthru
      _
    // Predicated region
    $region6: #{tpu_custom_call.1} parent=1 // pred_check
      _
    $region7: #{tpu_custom_call.1} parent=1 // pred_check_branch
      %23 = sbr.rel (0) target = $region9
    $region8: #{tpu_custom_call.1} parent=1 // pred_region
      %25 = vsyncadd [#allocation7], 0
      %s26 = sshll.u32 %s1, 4
      %s27 = int_to_ptr.hbm [resolvable:$true] %s26
      %s28 = sshll.u32 [#allocation6], 4
      %s29 = int_to_ptr.vmem [resolvable:$true] %s28
      %34 = dma.hbm_to_vmem [thread:$0]  %s27, 512, %s29, [#allocation7], 128, 128, 8
    $region9: #{tpu_custom_call.1} parent=1 // pred_fallthru
      _
    // Predicated region
    $region10: #{tpu_custom_call.1} parent=1 // pred_check
      _
    $region11: #{tpu_custom_call.1} parent=1 // pred_check_branch
      %36 = sbr.rel (0) target = $region13
    $region12: #{tpu_custom_call.1} parent=1 // pred_region
      _
    $region13: #{tpu_custom_call.1} parent=1 // pred_fallthru
      _
    // Predicated region
    $region14: #{tpu_custom_call.1} parent=1 // pred_check
      _
    $region15: #{tpu_custom_call.1} parent=1 // pred_check_branch
      %38 = sbr.rel (0) target = $region17
    $region16: #{tpu_custom_call.1} parent=1 // pred_region
      %40 = dma.done [#allocation4], 128
    $region17: #{tpu_custom_call.1} parent=1 // pred_fallthru
      _
    // Predicated region
    $region18: #{tpu_custom_call.1} parent=1 // pred_check
      _
    $region19: #{tpu_custom_call.1} parent=1 // pred_check_branch
      %42 = sbr.rel (0) target = $region21
    $region20: #{tpu_custom_call.1} parent=1 // pred_region
      %44 = dma.done [#allocation7], 512
    $region21: #{tpu_custom_call.1} parent=1 // pred_fallthru
      _
    %p45 = scmp.eq.s32.totalorder 0, 0
    // Predicated region
    $region22: #{tpu_custom_call.1} parent=1 // pred_check
      %p46 = pneg %p45
    $region23: #{tpu_custom_call.1} parent=1 // pred_check_branch
      %48 = sbr.rel (%p46) target = $region25
    $region24: #{tpu_custom_call.1} parent=1 // pred_region
      %49 = vst [vmem:[#allocation2] sm:$0xff] 0.0
    $region25: #{tpu_custom_call.1} parent=1 // pred_fallthru
      _
    %v50 = vld [vmem:[#allocation3] sm:$0xff]
    %v51 = vld [vmem:[#allocation6] sm:$0xff]
    %v52 = vld [vmem:[#allocation6 + $0x8] sm:$0xff]
    %v53 = vld [vmem:[#allocation6 + $0x10] sm:$0xff]
    %v54 = vld [vmem:[#allocation6 + $0x18] sm:$0xff]
    %v55 = vld [vmem:[#allocation2] sm:$0xff]
    %vm56 = vcmask 261120
    %v58 = vsel %vm56, %v50, 0
    %60 = vmatpush.msra.mxu0 0.0
    %61 = vmatpush.msra.mxu0 0.0
    %62 = vmatpush.msra.mxu0 0.0
    %63 = vmatpush.msra.mxu0 0.0
    %64 = vmatpush.msra.mxu0 0.0
    %65 = vmatpush.msra.mxu0 0.0
    %66 = vmatpush.msra.mxu0 0.0
    %67 = vmatpush.msra.mxu0 0.0
    %68 = vmatpush.msra.mxu0 0.0
    %69 = vmatpush.msra.mxu0 0.0
    %70 = vmatpush.msra.mxu0 0.0
    %71 = vmatpush.msra.mxu0 0.0
    %72 = vmatpush.msra.mxu0 %v54
    %73 = vmatpush.msra.mxu0 %v53
    %74 = vmatpush.msra.mxu0 %v52
    %75 = vmatpush.msra.mxu0 %v51
    %76 = vmatmul.f32.gmra.mxu0 %v58
    %v77 = vpop.f32.mrf.mxu0
    %v78 = vadd.f32 0.0, %v77
    %79 = vdwg.mxu0
    %v80 = vadd.f32 %v55, %v78
    %81 = vst [vmem:[#allocation2] sm:$0xff] %v80
    // Predicated region
    $region26: #{tpu_custom_call.1} parent=1 // pred_check
      %p82 = pneg %p45
    $region27: #{tpu_custom_call.1} parent=1 // pred_check_branch
      %84 = sbr.rel (%p82) target = $region29
    $region28: #{tpu_custom_call.1} parent=1 // pred_region
      %v85 = vld [vmem:[#allocation2] sm:$0xff]
      %v86 = vld [vmem:[%s2] sm:$0x1]
      %v88 = vperm.slane %v86, 0
      %v90 = vadd.f32 %v85, %v88
      %91 = vst [vmem:[#allocation8] sm:$0xff] %v90
    $region29: #{tpu_custom_call.1} parent=1 // pred_fallthru
      _
    // Predicated region
    $region30: #{tpu_custom_call.1} parent=1 // pred_check
      _
    $region31: #{tpu_custom_call.1} parent=1 // pred_check_branch
      %93 = sbr.rel (0) target = $region33
    $region32: #{tpu_custom_call.1} parent=1 // pred_region
      %95 = vsyncadd [#allocation5], 0
      %s97 = sshll.u32 [#allocation8], 4
      %s98 = int_to_ptr.vmem [resolvable:$true] %s97
      %s99 = sshll.u32 %s3, 4
      %s100 = int_to_ptr.hbm [resolvable:$true] %s99
      %102 = dma.vmem_to_hbm [thread:$0]  %s98, 128, %s100, [#allocation5]
    $region33: #{tpu_custom_call.1} parent=1 // pred_fallthru
      _
    // Predicated region
    $region34: #{tpu_custom_call.1} parent=1 // pred_check
      _
    $region35: #{tpu_custom_call.1} parent=1 // pred_check_branch
      %104 = sbr.rel (0) target = $region37
    $region36: #{tpu_custom_call.1} parent=1 // pred_region
      %106 = dma.done [#allocation5], 128
    $region37: #{tpu_custom_call.1} parent=1 // pred_fallthru
      _
    %107 = vsyncpa [#allocation4], 1
    %108 = vsyncpa [#allocation7], 1
    %109 = vsyncpa [#allocation5], 1

// kernel: tpu_custom_call.1
$region0: #{tpu_custom_call.1}
  #allocation0 [shape = 'u32[]', space=smem, size = 0x4, offset = 0x4, fixed_abs, tag = 'smem constant byte address 0x4 - core index']
  #allocation1 [shape = 'u32[72,128]{1,0:T(1,128)}', space=vmem, size = 0x9000, scoped, tag = 'internal scratch']
  #allocation2 [shape = 'f32[8,128]{1,0:T(8,128)}', space=vmem, size = 0x1000, scoped, tag = 'scratch operand']
  %s0 = inlined_call_operand.hbm [shape: f32[8,32], index: 0, kind: input, shape index: {}]
  %s1 = inlined_call_operand.hbm [shape: f32[32,128], index: 1, kind: input, shape index: {}]
  %s2 = inlined_call_operand.vmem [shape: f32[1,128], index: 2, kind: input, shape index: {}]
  %s3 = inlined_call_operand.hbm [shape: f32[8,128], index: 3, kind: output, shape index: {}]
  %s4 = sld [smem:[#allocation0]]
  $region38: #{tpu_custom_call.1} parent=0
    _
  %s6 = ssub.s32 1, %s4
  %s7 = scalar_select 0, %s6, %s4
  $region1: #{tpu_custom_call.1} parent=0
    #allocation3 [shape = 'u8[4096]{0}', space=vmem, size = 0x1000, scoped, tag = 'input window, operand 0, single buffered']
    #allocation4 [shape = 's32[1]{0}', space=sflag, size = 0x4, scoped, tag = 'scoped memory for tpu_custom_call.1']
    #allocation5 [shape = 's32[1]{0}', space=sflag, size = 0x4, scoped, tag = 'scoped memory for tpu_custom_call.1']
    #allocation6 [shape = 'u8[16384]{0}', space=vmem, size = 0x4000, scoped, tag = 'input window, operand 1, single buffered']
    #allocation7 [shape = 's32[1]{0}', space=sflag, size = 0x4, scoped, tag = 'scoped memory for tpu_custom_call.1']
    #allocation8 [shape = 'u8[4096]{0}', space=vmem, size = 0x1000, scoped, tag = 'output window, operand 0, single buffered']
    %8 = vsyncpa [#allocation4], 0
    %9 = vsyncpa [#allocation7], 0
    %10 = vsyncpa [#allocation5], 0
    // Predicated region
    $region2: #{tpu_custom_call.1} parent=1 // pred_check
      _
    $region3: #{tpu_custom_call.1} parent=1 // pred_check_branch
      %12 = sbr.rel (0) target = $region5
    $region4: #{tpu_custom_call.1} parent=1 // pred_region
      %14 = vsyncadd [#allocation4], 0
      %s16 = sshll.u32 %s0, 4
      %s17 = int_to_ptr.hbm [resolvable:$true] %s16
      %s18 = sshll.u32 [#allocation3], 4
      %s19 = int_to_ptr.vmem [resolvable:$true] %s18
      %21 = dma.hbm_to_vmem [thread:$0]  %s17, 128, %s19, [#allocation4]
    $region5: #{tpu_custom_call.1} parent=1 // pred_fallthru
      _
    // Predicated region
    $region6: #{tpu_custom_call.1} parent=1 // pred_check
      _
    $region7: #{tpu_custom_call.1} parent=1 // pred_check_branch
      %23 = sbr.rel (0) target = $region9
    $region8: #{tpu_custom_call.1} parent=1 // pred_region
      %25 = vsyncadd [#allocation7], 0
      %s26 = sshll.u32 %s1, 4
      %s27 = int_to_ptr.hbm [resolvable:$true] %s26
      %s28 = sshll.u32 [#allocation6], 4
      %s29 = int_to_ptr.vmem [resolvable:$true] %s28
      %34 = dma.hbm_to_vmem [thread:$0]  %s27, 512, %s29, [#allocation7], 128, 128, 8
    $region9: #{tpu_custom_call.1} parent=1 // pred_fallthru
      _
    // Predicated region
    $region10: #{tpu_custom_call.1} parent=1 // pred_check
      _
    $region11: #{tpu_custom_call.1} parent=1 // pred_check_branch
      %36 = sbr.rel (0) target = $region13
    $region12: #{tpu_custom_call.1} parent=1 // pred_region
      _
    $region13: #{tpu_custom_call.1} parent=1 // pred_fallthru
      _
    // Predicated region
    $region14: #{tpu_custom_call.1} parent=1 // pred_check
      _
    $region15: #{tpu_custom_call.1} parent=1 // pred_check_branch
      %38 = sbr.rel (0) target = $region17
    $region16: #{tpu_custom_call.1} parent=1 // pred_region
      %40 = dma.done [#allocation4], 128
    $region17: #{tpu_custom_call.1} parent=1 // pred_fallthru
      _
    // Predicated region
    $region18: #{tpu_custom_call.1} parent=1 // pred_check
      _
    $region19: #{tpu_custom_call.1} parent=1 // pred_check_branch
      %42 = sbr.rel (0) target = $region21
    $region20: #{tpu_custom_call.1} parent=1 // pred_region
      %44 = dma.done [#allocation7], 512
    $region21: #{tpu_custom_call.1} parent=1 // pred_fallthru
      _
    %p45 = scmp.eq.s32.totalorder 0, 0
    // Predicated region
    $region22: #{tpu_custom_call.1} parent=1 // pred_check
      %p46 = pneg %p45
    $region23: #{tpu_custom_call.1} parent=1 // pred_check_branch
      %48 = sbr.rel (%p46) target = $region25
    $region24: #{tpu_custom_call.1} parent=1 // pred_region
      %49 = vst [vmem:[#allocation2] sm:$0xff] 0.0
    $region25: #{tpu_custom_call.1} parent=1 // pred_fallthru
      _
    %v50 = vld [vmem:[#allocation3] sm:$0xff]
    %v51 = vld [vmem:[#allocation6] sm:$0xff]
    %v52 = vld [vmem:[#allocation6 + $0x8] sm:$0xff]
    %v53 = vld [vmem:[#allocation6 + $0x10] sm:$0xff]
    %v54 = vld [vmem:[#allocation6 + $0x18] sm:$0xff]
    %v55 = vld [vmem:[#allocation2] sm:$0xff]
    %vm56 = vcmask 261120
    %v58 = vsel %vm56, %v50, 0
    %60 = vmatpush.msra.mxu0 0.0
    %61 = vmatpush.msra.mxu0 0.0
    %62 = vmatpush.msra.mxu0 0.0
    %63 = vmatpush.msra.mxu0 0.0
    %64 = vmatpush.msra.mxu0 0.0
    %65 = vmatpush.msra.mxu0 0.0
    %66 = vmatpush.msra.mxu0 0.0
    %67 = vmatpush.msra.mxu0 0.0
    %68 = vmatpush.msra.mxu0 0.0
    %69 = vmatpush.msra.mxu0 0.0
    %70 = vmatpush.msra.mxu0 0.0
    %71 = vmatpush.msra.mxu0 0.0
    %72 = vmatpush.msra.mxu0 %v54
    %73 = vmatpush.msra.mxu0 %v53
    %74 = vmatpush.msra.mxu0 %v52
    %75 = vmatpush.msra.mxu0 %v51
    %76 = vmatmul.f32.gmra.mxu0 %v58
    %v77 = vpop.f32.mrf.mxu0
    %v78 = vadd.f32 0.0, %v77
    %79 = vdwg.mxu0
    %v80 = vadd.f32 %v55, %v78
    %81 = vst [vmem:[#allocation2] sm:$0xff] %v80
    // Predicated region
    $region26: #{tpu_custom_call.1} parent=1 // pred_check
      %p82 = pneg %p45
    $region27: #{tpu_custom_call.1} parent=1 // pred_check_branch
      %84 = sbr.rel (%p82) target = $region29
    $region28: #{tpu_custom_call.1} parent=1 // pred_region
      %v85 = vld [vmem:[#allocation2] sm:$0xff]
      %v86 = vld [vmem:[%s2] sm:$0x1]
      %v88 = vperm.slane %v86, 0
      %v90 = vadd.f32 %v85, %v88
      %91 = vst [vmem:[#allocation8] sm:$0xff] %v90
    $region29: #{tpu_custom_call.1} parent=1 // pred_fallthru
      _
    // Predicated region
    $region30: #{tpu_custom_call.1} parent=1 // pred_check
      _
    $region31: #{tpu_custom_call.1} parent=1 // pred_check_branch
      %93 = sbr.rel (0) target = $region33
    $region32: #{tpu_custom_call.1} parent=1 // pred_region
      %95 = vsyncadd [#allocation5], 0
      %s97 = sshll.u32 [#allocation8], 4
      %s98 = int_to_ptr.vmem [resolvable:$true] %s97
      %s99 = sshll.u32 %s3, 4
      %s100 = int_to_ptr.hbm [resolvable:$true] %s99
      %102 = dma.vmem_to_hbm [thread:$0]  %s98, 128, %s100, [#allocation5]
    $region33: #{tpu_custom_call.1} parent=1 // pred_fallthru
      _
    // Predicated region
    $region34: #{tpu_custom_call.1} parent=1 // pred_check
      _
    $region35: #{tpu_custom_call.1} parent=1 // pred_check_branch
      %104 = sbr.rel (0) target = $region37
    $region36: #{tpu_custom_call.1} parent=1 // pred_region
      %106 = dma.done [#allocation5], 128
    $region37: #{tpu_custom_call.1} parent=1 // pred_fallthru
      _
    %107 = vsyncpa [#allocation4], 1
    %108 = vsyncpa [#allocation7], 1
    %109 = vsyncpa [#allocation5], 1

</llo_original>
